<compile_context>
chip_gen: v7x
topology: tpu7x:2x2x1
jax: 0.10.0
libtpu: 0.0.40
codegen_flags: <defaults>
</compile_context>

<pallas_src>
import jax
import jax.numpy as jnp
from jax.experimental import pallas as pl
from jax.experimental.pallas import tpu as pltpu

_PAD = 8  # payload row offset inside the padded VMEM scratch (sublane aligned)


def _cnn_encoder_kernel(x_ref, w12_ref, b12_ref, w3_ref, b3_ref, o_ref,
                        xpad_ref, hpad_ref):
    # x_ref   : (Bt, L, E)      unpadded input block
    # w12_ref : (5, E, 2H)      fused conv1(k=5) + conv2(k=3 -> taps 1..3) weights
    # b12_ref : (1, 2H) f32     concat(b1, b2)
    # w3_ref  : (5, 2H, H)      conv3 weights, (tap, in, out)
    # b3_ref  : (1, H)  f32
    # o_ref   : (Bt, L, H)      output block
    # xpad_ref: (Bt, L+10, E)   VMEM scratch, payload rows [8, 8+L)
    # hpad_ref: (Bt, L+10, 2H)  VMEM scratch for the 2H-wide intermediate
    Bt, L, E = x_ref.shape
    H = o_ref.shape[2]
    H2 = 2 * H

    # Zero ONLY the 2+2 halo rows, every step. (Not @pl.when(pid==0): VMEM scratch is
    # per-TensorCore, so gating on pid==0 would leave the other core's halos garbage if
    # the batch grid axis shards across v7x's two TCs.)
    xpad_ref[:, _PAD - 2:_PAD, :] = jnp.zeros((Bt, 2, E), xpad_ref.dtype)
    xpad_ref[:, _PAD + L:_PAD + L + 2, :] = jnp.zeros((Bt, 2, E), xpad_ref.dtype)
    hpad_ref[:, _PAD - 2:_PAD, :] = jnp.zeros((Bt, 2, H2), hpad_ref.dtype)
    hpad_ref[:, _PAD + L:_PAD + L + 2, :] = jnp.zeros((Bt, 2, H2), hpad_ref.dtype)
    # Payload at sublane-aligned offset 8 (unmasked, aligned stores).
    # TODO(synk): drop this VMEM->VMEM staging copy by taking x with memory_space=pl.ANY
    # and manually DMAing each (bt, L, E) block into xpad_ref at row offset 8 (manual
    # double buffer); deferred because the cross-step prefetch interacts with megacore
    # grid sharding and the copy is not the measured bottleneck at these sizes.
    xpad_ref[:, _PAD:_PAD + L, :] = x_ref[...]

    # Stage 1+2 fused: conv1 (k=5, pad=2) and conv2 (k=3, pad=1) as 5 shifted
    # (Bt*L, E) @ (E, 2H) MXU matmuls into one f32 accumulator.
    # TODO(synk): 4/5 slice starts (rows 6,7,9,10) are sublane-misaligned and the
    # (Bt, L, C)->(Bt*L, C) reshape is not a view for Bt>1; if a bundle dump at
    # production sizes shows vld/vst/XLU (not MXU) binding, switch to an im2col
    # (Bt*L, 5E) @ (5E, 2H) single matmul per stage (deeper K, fewer MXU pushes).
    acc12 = jnp.zeros((Bt * L, H2), jnp.float32)
    for k in range(5):
        xs = xpad_ref[:, _PAD - 2 + k:_PAD - 2 + k + L, :].reshape(Bt * L, E)
        acc12 += jnp.dot(xs, w12_ref[k], preferred_element_type=jnp.float32)
    h = jnp.maximum(acc12 + b12_ref[...], 0.0)   # bias + ReLU in f32
    # dropout -> identity (inference mode)

    # Padded intermediate for conv3: aligned payload write, halos zeroed above.
    hpad_ref[:, _PAD:_PAD + L, :] = h.reshape(Bt, L, H2).astype(hpad_ref.dtype)

    # Stage 3: conv3 (k=5, pad=2) over the 2H-channel intermediate.
    acc3 = jnp.zeros((Bt * L, H), jnp.float32)
    for k in range(5):
        hs = hpad_ref[:, _PAD - 2 + k:_PAD - 2 + k + L, :].reshape(Bt * L, H2)
        acc3 += jnp.dot(hs, w3_ref[k], preferred_element_type=jnp.float32)
    out = jnp.maximum(acc3 + b3_ref[...], 0.0)
    # second dropout -> identity (inference mode)
    # TODO(synk): H < 128 makes this a masked (vst.msk) store. A lane-dense out block
    # (bt, L*H) needs a sublane->lane merging relayout of the (Bt*L, H) matmul result,
    # and padding H up to 128 would ~6x the output-side HBM traffic at H=32; deferred
    # until a bundle dump shows the store slot (not MXU) is the binding one.
    o_ref[...] = out.reshape(Bt, L, H).astype(o_ref.dtype)


def _is_single_tensorcore_chip():
    """True for chips known to have one TensorCore (v5e / v6e); False otherwise."""
    try:
        kind = jax.devices()[0].device_kind.lower()
    except Exception:
        return False
    return any(t in kind for t in ("v5 lite", "v5lite", "v5e", "v6 lite", "v6lite", "v6e"))


def _vmem_bytes(bt, L, E, H, itemsize, out_itemsize):
    """VMEM actually used per step: double-buffered x/out blocks, single-buffered
    weights/biases (pl.Buffered(1)), and the xpad/hpad scratch buffers."""
    H2 = 2 * H
    lpad = L + _PAD + 2
    x_io = 2 * bt * L * E * itemsize
    o_io = 2 * bt * L * H * out_itemsize
    wts = (5 * E * H2 + 5 * H2 * H) * itemsize
    bias = (H2 + H) * 4
    scratch = bt * lpad * (E + H2) * itemsize
    return x_io + o_io + wts + bias + scratch


def _pick_block_b(B, L, E, H, itemsize, out_itemsize):
    """Batch elements folded per grid step. Single-TC chips (v5e/v6e): aim for
    M = bt*L >= 512 rows per matmul (grid is a serial loop there, so fewer/bigger
    steps win). Possibly-multi-TC chips (v7x): also keep >= 2 grid steps so the
    batch axis can shard across the two TensorCores."""
    if L % 8 != 0:
        return 1  # keep the (Bt, L, C) -> (Bt*L, C) reshape layout-preserving
    bt = max(1, min(B, pl.cdiv(512, L)))
    # vreg pressure: the f32 (bt*L, 2H) accumulator is live across 5 unrolled taps.
    while bt > 1 and bt * L * 2 * H * 4 > 128 * 1024:
        bt -= 1
    # VMEM budget that also fits v7x (64 MiB physical; keep ~half for headroom).
    while bt > 1 and _vmem_bytes(bt, L, E, H, itemsize, out_itemsize) > 28 * (1 << 20):
        bt -= 1
    if not _is_single_tensorcore_chip() and B >= 2:
        bt = min(bt, max(1, B // 2))
    return bt


def cnn_encoder_pallas(x, w1, b1, w2, b2, w3, b3, *, block_b=None,
                       compute_dtype=jnp.bfloat16):
    """x: (B, L, E). Weights in PyTorch OIH layout:
    w1 (H, E, 5), w2 (H, E, 3), w3 (H, 2H, 5); biases (H,).
    compute_dtype defaults to bfloat16 (bf16 MXU inputs, f32 accumulation) on all
    generations; pass jnp.float32 for exact f32."""
    B, L, E = x.shape
    H = w1.shape[0]
    out_dtype = x.dtype
    dt = jnp.dtype(compute_dtype if compute_dtype is not None else x.dtype)

    # --- one-time weight prep: fuse conv1/conv2 into a single 5-tap weight (5, E, 2H);
    # conv2 (pad=1) occupies taps 1..3, taps 0/4 zero — stage 1+2 is 5 MXU pushes
    # producing the concat layout conv3 consumes directly.
    w1k = jnp.transpose(w1, (2, 1, 0)).astype(dt)             # (5, E, H)
    w2k = jnp.transpose(w2, (2, 1, 0)).astype(dt)             # (3, E, H)
    w2k = jnp.pad(w2k, ((1, 1), (0, 0), (0, 0)))              # (5, E, H)
    w12 = jnp.concatenate([w1k, w2k], axis=-1)                # (5, E, 2H)
    b12 = jnp.concatenate([b1, b2]).reshape(1, 2 * H).astype(jnp.float32)
    w3k = jnp.transpose(w3, (2, 1, 0)).astype(dt)             # (5, 2H, H)
    b3r = b3.reshape(1, H).astype(jnp.float32)

    itemsize = dt.itemsize
    out_itemsize = jnp.dtype(out_dtype).itemsize
    bt = block_b if block_b is not None else _pick_block_b(
        B, L, E, H, itemsize, out_itemsize)

    x = x.astype(dt)
    Bp = pl.cdiv(B, bt) * bt
    if Bp != B:  # pad batch to a multiple of the block (rare with the heuristic)
        x = jnp.concatenate([x, jnp.zeros((Bp - B, L, E), dt)], axis=0)
    n_steps = Bp // bt

    # Raise the scoped VMEM limit to what this kernel actually uses (+75% headroom and
    # +4 MiB for compiler-internal scratch), clamped to v7x's 64 MiB physical VMEM so one
    # setting is safe on v5e / v6e / v7x.
    needed = _vmem_bytes(bt, L, E, H, itemsize, out_itemsize)
    vmem_limit = int(min(max(needed * 7 // 4 + (4 << 20), 32 << 20), 64 << 20))

    invariant = dict(pipeline_mode=pl.Buffered(1))  # grid-invariant -> single-buffer

    grid_spec = pltpu.PrefetchScalarGridSpec(
        num_scalar_prefetch=0,
        grid=(n_steps,),
        in_specs=[
            pl.BlockSpec((bt, L, E), lambda i: (i, 0, 0)),
            # Weights / biases never change block index -> single-buffered.
            pl.BlockSpec((5, E, 2 * H), lambda i: (0, 0, 0), **invariant),
            pl.BlockSpec((1, 2 * H), lambda i: (0, 0), **invariant),
            pl.BlockSpec((5, 2 * H, H), lambda i: (0, 0, 0), **invariant),
            pl.BlockSpec((1, H), lambda i: (0, 0), **invariant),
        ],
        out_specs=pl.BlockSpec((bt, L, H), lambda i: (i, 0, 0)),
        scratch_shapes=[
            pltpu.VMEM((bt, L + _PAD + 2, E), dt),
            pltpu.VMEM((bt, L + _PAD + 2, 2 * H), dt),
        ],
    )

    out = pl.pallas_call(
        _cnn_encoder_kernel,
        out_shape=jax.ShapeDtypeStruct((Bp, L, H), out_dtype),
        grid_spec=grid_spec,
        compiler_params=pltpu.CompilerParams(
            # TODO(synk): on v7x consider pltpu.CORE_PARALLEL on this axis (or pl.core_map
            # over create_tensorcore_mesh); plain "parallel" is kept here because it is
            # safe and valid on every generation.
            dimension_semantics=("parallel",),
            vmem_limit_bytes=vmem_limit),
    )(x, w12, b12, w3k, b3r)
    return out if Bp == B else out[:B]


def cnn_encoder_ref(x, w1, b1, w2, b2, w3, b3):
    """Pure-JAX reference mirroring the PyTorch forward (eval mode)."""
    xt = jnp.transpose(x, (0, 2, 1))  # (B, E, L) — PyTorch NCL

    def conv1d(inp, w, b, pad):
        out = jax.lax.conv_general_dilated(
            inp, w, window_strides=(1,), padding=[(pad, pad)],
            dimension_numbers=("NCH", "OIH", "NCH"))
        return out + b[None, :, None]

    c1 = conv1d(xt, w1, b1, 2)
    c2 = conv1d(xt, w2, b2, 1)
    h = jax.nn.relu(jnp.concatenate([c1, c2], axis=1))
    c3 = jax.nn.relu(conv1d(h, w3, b3, 2))
    return jnp.transpose(c3, (0, 2, 1))  # (B, L, H)


if __name__ == "__main__":
    B, L, E, H = 2, 16, 32, 32  # batch, seq_len, embedding_dim, hidden_dim

    key = jax.random.PRNGKey(0)
    ks = jax.random.split(key, 7)
    x = jax.random.normal(ks[0], (B, L, E), jnp.float32)
    w1 = jax.random.normal(ks[1], (H, E, 5), jnp.float32) * 0.1
    b1 = jax.random.normal(ks[2], (H,), jnp.float32) * 0.1
    w2 = jax.random.normal(ks[3], (H, E, 3), jnp.float32) * 0.1
    b2 = jax.random.normal(ks[4], (H,), jnp.float32) * 0.1
    w3 = jax.random.normal(ks[5], (H, 2 * H, 5), jnp.float32) * 0.1
    b3 = jax.random.normal(ks[6], (H,), jnp.float32) * 0.1

    ref = cnn_encoder_ref(x, w1, b1, w2, b2, w3, b3)

    # Default path: bf16 MXU inputs, f32 accumulation (recommended on v5e/v6e/v7x).
    out_bf16 = jax.block_until_ready(cnn_encoder_pallas(x, w1, b1, w2, b2, w3, b3))
    assert out_bf16.shape == (B, L, H), out_bf16.shape
    assert jnp.allclose(out_bf16, ref, atol=3e-1, rtol=1e-1), float(
        jnp.max(jnp.abs(out_bf16 - ref)))

    # Exact f32 path.
    out_f32 = jax.block_until_ready(
        cnn_encoder_pallas(x, w1, b1, w2, b2, w3, b3, compute_dtype=jnp.float32))
    assert out_f32.shape == (B, L, H), out_f32.shape
    assert jnp.allclose(out_f32, ref, atol=1e-4, rtol=1e-4), float(
        jnp.max(jnp.abs(out_f32 - ref)))

    print("KERNEL_OK")
</pallas_src>

<mosaic_0001>
module attributes {stable_mosaic.version = 11 : i64} {
  func.func @_cnn_encoder_kernel(%arg0: i32, %arg1: memref<1x16x32xbf16, #tpu.memory_space<vmem>>, %arg2: memref<5x32x64xbf16, #tpu.memory_space<vmem>>, %arg3: memref<1x64xf32, #tpu.memory_space<vmem>>, %arg4: memref<5x64x32xbf16, #tpu.memory_space<vmem>>, %arg5: memref<1x32xf32, #tpu.memory_space<vmem>>, %arg6: memref<1x16x32xf32, #tpu.memory_space<vmem>>, %arg7: memref<1x26x32xbf16, #tpu.memory_space<vmem>>, %arg8: memref<1x26x64xbf16, #tpu.memory_space<vmem>>) attributes {dimension_semantics = [#tpu.dimension_semantics<parallel>], iteration_bounds = array<i64: 2>, scalar_prefetch = 0 : i64, scratch_operands = 2 : i64, tpu.core_type = #tpu.core_type<tc>, window_params = [{transform_indices = @transform_0, window_bounds = array<i64: 1, 16, 32>}, {pipeline_mode = #tpu.pipeline_mode<synchronous>, transform_indices = @transform_1, window_bounds = array<i64: 5, 32, 64>}, {pipeline_mode = #tpu.pipeline_mode<synchronous>, transform_indices = @transform_2, window_bounds = array<i64: 1, 64>}, {pipeline_mode = #tpu.pipeline_mode<synchronous>, transform_indices = @transform_3, window_bounds = array<i64: 5, 64, 32>}, {pipeline_mode = #tpu.pipeline_mode<synchronous>, transform_indices = @transform_4, window_bounds = array<i64: 1, 32>}, {transform_indices = @transform_5, window_bounds = array<i64: 1, 16, 32>}]} {
    %cst = arith.constant 0.000000e+00 : bf16
    %0 = vector.broadcast %cst : bf16 to vector<1x2x32xbf16>
    %c0 = arith.constant 0 : index
    %c6 = arith.constant 6 : index
    %c0_0 = arith.constant 0 : index
    %1 = vector.load %arg7[%c0, %c6, %c0_0] : memref<1x26x32xbf16, #tpu.memory_space<vmem>>, vector<1x2x32xbf16>
    tpu.vector_store %arg7[%c0, %c6, %c0_0], %0 {strides = array<i32>} : memref<1x26x32xbf16, #tpu.memory_space<vmem>>, vector<1x2x32xbf16>,
    %cst_1 = arith.constant 0.000000e+00 : bf16
    %2 = vector.broadcast %cst_1 : bf16 to vector<1x2x32xbf16>
    %c0_2 = arith.constant 0 : index
    %c24 = arith.constant 24 : index
    %c0_3 = arith.constant 0 : index
    %3 = vector.load %arg7[%c0_2, %c24, %c0_3] : memref<1x26x32xbf16, #tpu.memory_space<vmem>>, vector<1x2x32xbf16>
    tpu.vector_store %arg7[%c0_2, %c24, %c0_3], %2 {strides = array<i32>} : memref<1x26x32xbf16, #tpu.memory_space<vmem>>, vector<1x2x32xbf16>,
    %cst_4 = arith.constant 0.000000e+00 : bf16
    %4 = vector.broadcast %cst_4 : bf16 to vector<1x2x64xbf16>
    %c0_5 = arith.constant 0 : index
    %c6_6 = arith.constant 6 : index
    %c0_7 = arith.constant 0 : index
    %5 = vector.load %arg8[%c0_5, %c6_6, %c0_7] : memref<1x26x64xbf16, #tpu.memory_space<vmem>>, vector<1x2x64xbf16>
    tpu.vector_store %arg8[%c0_5, %c6_6, %c0_7], %4 {strides = array<i32>} : memref<1x26x64xbf16, #tpu.memory_space<vmem>>, vector<1x2x64xbf16>,
    %cst_8 = arith.constant 0.000000e+00 : bf16
    %6 = vector.broadcast %cst_8 : bf16 to vector<1x2x64xbf16>
    %c0_9 = arith.constant 0 : index
    %c24_10 = arith.constant 24 : index
    %c0_11 = arith.constant 0 : index
    %7 = vector.load %arg8[%c0_9, %c24_10, %c0_11] : memref<1x26x64xbf16, #tpu.memory_space<vmem>>, vector<1x2x64xbf16>
    tpu.vector_store %arg8[%c0_9, %c24_10, %c0_11], %6 {strides = array<i32>} : memref<1x26x64xbf16, #tpu.memory_space<vmem>>, vector<1x2x64xbf16>,
    %c0_12 = arith.constant 0 : index
    %c0_13 = arith.constant 0 : index
    %c0_14 = arith.constant 0 : index
    %8 = vector.load %arg1[%c0_12, %c0_13, %c0_14] : memref<1x16x32xbf16, #tpu.memory_space<vmem>>, vector<1x16x32xbf16>
    %c0_15 = arith.constant 0 : index
    %c8 = arith.constant 8 : index
    %c0_16 = arith.constant 0 : index
    %9 = vector.load %arg7[%c0_15, %c8, %c0_16] : memref<1x26x32xbf16, #tpu.memory_space<vmem>>, vector<1x16x32xbf16>
    tpu.vector_store %arg7[%c0_15, %c8, %c0_16], %8 {strides = array<i32>} : memref<1x26x32xbf16, #tpu.memory_space<vmem>>, vector<1x16x32xbf16>,
    %cst_17 = arith.constant 0.000000e+00 : f32
    %10 = vector.broadcast %cst_17 : f32 to vector<16x64xf32>
    %c0_18 = arith.constant 0 : index
    %c6_19 = arith.constant 6 : index
    %c0_20 = arith.constant 0 : index
    %11 = vector.load %arg7[%c0_18, %c6_19, %c0_20] : memref<1x26x32xbf16, #tpu.memory_space<vmem>>, vector<1x16x32xbf16>
    %12 = vector.shape_cast %11 : vector<1x16x32xbf16> to vector<16x32xbf16>
    %c0_21 = arith.constant 0 : index
    %c0_22 = arith.constant 0 : index
    %c0_23 = arith.constant 0 : index
    %13 = vector.load %arg2[%c0_21, %c0_22, %c0_23] : memref<5x32x64xbf16, #tpu.memory_space<vmem>>, vector<1x32x64xbf16>
    %14 = vector.shape_cast %13 : vector<1x32x64xbf16> to vector<32x64xbf16>
    %cst_24 = arith.constant dense<0.000000e+00> : vector<16x64xf32>
    %15 = tpu.matmul %12, %14, %cst_24 {dimension_numbers = #tpu.dot_dimension_numbers<[1], [0], [0], [1], [0, 0, 1, 1], [], []>} : vector<16x32xbf16>, vector<32x64xbf16>, vector<16x64xf32> -> vector<16x64xf32>
    %16 = arith.addf %10, %15 : vector<16x64xf32>
    %c0_25 = arith.constant 0 : index
    %c7 = arith.constant 7 : index
    %c0_26 = arith.constant 0 : index
    %17 = vector.load %arg7[%c0_25, %c7, %c0_26] : memref<1x26x32xbf16, #tpu.memory_space<vmem>>, vector<1x16x32xbf16>
    %18 = vector.shape_cast %17 : vector<1x16x32xbf16> to vector<16x32xbf16>
    %c1 = arith.constant 1 : index
    %c0_27 = arith.constant 0 : index
    %c0_28 = arith.constant 0 : index
    %19 = vector.load %arg2[%c1, %c0_27, %c0_28] : memref<5x32x64xbf16, #tpu.memory_space<vmem>>, vector<1x32x64xbf16>
    %20 = vector.shape_cast %19 : vector<1x32x64xbf16> to vector<32x64xbf16>
    %cst_29 = arith.constant dense<0.000000e+00> : vector<16x64xf32>
    %21 = tpu.matmul %18, %20, %cst_29 {dimension_numbers = #tpu.dot_dimension_numbers<[1], [0], [0], [1], [0, 0, 1, 1], [], []>} : vector<16x32xbf16>, vector<32x64xbf16>, vector<16x64xf32> -> vector<16x64xf32>
    %22 = arith.addf %16, %21 : vector<16x64xf32>
    %c0_30 = arith.constant 0 : index
    %c8_31 = arith.constant 8 : index
    %c0_32 = arith.constant 0 : index
    %23 = vector.load %arg7[%c0_30, %c8_31, %c0_32] : memref<1x26x32xbf16, #tpu.memory_space<vmem>>, vector<1x16x32xbf16>
    %24 = vector.shape_cast %23 : vector<1x16x32xbf16> to vector<16x32xbf16>
    %c2 = arith.constant 2 : index
    %c0_33 = arith.constant 0 : index
    %c0_34 = arith.constant 0 : index
    %25 = vector.load %arg2[%c2, %c0_33, %c0_34] : memref<5x32x64xbf16, #tpu.memory_space<vmem>>, vector<1x32x64xbf16>
    %26 = vector.shape_cast %25 : vector<1x32x64xbf16> to vector<32x64xbf16>
    %cst_35 = arith.constant dense<0.000000e+00> : vector<16x64xf32>
    %27 = tpu.matmul %24, %26, %cst_35 {dimension_numbers = #tpu.dot_dimension_numbers<[1], [0], [0], [1], [0, 0, 1, 1], [], []>} : vector<16x32xbf16>, vector<32x64xbf16>, vector<16x64xf32> -> vector<16x64xf32>
    %28 = arith.addf %22, %27 : vector<16x64xf32>
    %c0_36 = arith.constant 0 : index
    %c9 = arith.constant 9 : index
    %c0_37 = arith.constant 0 : index
    %29 = vector.load %arg7[%c0_36, %c9, %c0_37] : memref<1x26x32xbf16, #tpu.memory_space<vmem>>, vector<1x16x32xbf16>
    %30 = vector.shape_cast %29 : vector<1x16x32xbf16> to vector<16x32xbf16>
    %c3 = arith.constant 3 : index
    %c0_38 = arith.constant 0 : index
    %c0_39 = arith.constant 0 : index
    %31 = vector.load %arg2[%c3, %c0_38, %c0_39] : memref<5x32x64xbf16, #tpu.memory_space<vmem>>, vector<1x32x64xbf16>
    %32 = vector.shape_cast %31 : vector<1x32x64xbf16> to vector<32x64xbf16>
    %cst_40 = arith.constant dense<0.000000e+00> : vector<16x64xf32>
    %33 = tpu.matmul %30, %32, %cst_40 {dimension_numbers = #tpu.dot_dimension_numbers<[1], [0], [0], [1], [0, 0, 1, 1], [], []>} : vector<16x32xbf16>, vector<32x64xbf16>, vector<16x64xf32> -> vector<16x64xf32>
    %34 = arith.addf %28, %33 : vector<16x64xf32>
    %c0_41 = arith.constant 0 : index
    %c10 = arith.constant 10 : index
    %c0_42 = arith.constant 0 : index
    %35 = vector.load %arg7[%c0_41, %c10, %c0_42] : memref<1x26x32xbf16, #tpu.memory_space<vmem>>, vector<1x16x32xbf16>
    %36 = vector.shape_cast %35 : vector<1x16x32xbf16> to vector<16x32xbf16>
    %c4 = arith.constant 4 : index
    %c0_43 = arith.constant 0 : index
    %c0_44 = arith.constant 0 : index
    %37 = vector.load %arg2[%c4, %c0_43, %c0_44] : memref<5x32x64xbf16, #tpu.memory_space<vmem>>, vector<1x32x64xbf16>
    %38 = vector.shape_cast %37 : vector<1x32x64xbf16> to vector<32x64xbf16>
    %cst_45 = arith.constant dense<0.000000e+00> : vector<16x64xf32>
    %39 = tpu.matmul %36, %38, %cst_45 {dimension_numbers = #tpu.dot_dimension_numbers<[1], [0], [0], [1], [0, 0, 1, 1], [], []>} : vector<16x32xbf16>, vector<32x64xbf16>, vector<16x64xf32> -> vector<16x64xf32>
    %40 = arith.addf %34, %39 : vector<16x64xf32>
    %c0_46 = arith.constant 0 : index
    %c0_47 = arith.constant 0 : index
    %41 = vector.load %arg3[%c0_46, %c0_47] : memref<1x64xf32, #tpu.memory_space<vmem>>, vector<1x64xf32>
    %42 = vector.broadcast %41 : vector<1x64xf32> to vector<16x64xf32>
    %43 = arith.addf %40, %42 : vector<16x64xf32>
    %cst_48 = arith.constant 0.000000e+00 : f32
    %44 = vector.broadcast %cst_48 : f32 to vector<16x64xf32>
    %45 = arith.maximumf %43, %44 : vector<16x64xf32>
    %46 = vector.shape_cast %45 : vector<16x64xf32> to vector<1x16x64xf32>
    %47 = arith.truncf %46 : vector<1x16x64xf32> to vector<1x16x64xbf16>
    %c0_49 = arith.constant 0 : index
    %c8_50 = arith.constant 8 : index
    %c0_51 = arith.constant 0 : index
    %48 = vector.load %arg8[%c0_49, %c8_50, %c0_51] : memref<1x26x64xbf16, #tpu.memory_space<vmem>>, vector<1x16x64xbf16>
    tpu.vector_store %arg8[%c0_49, %c8_50, %c0_51], %47 {strides = array<i32>} : memref<1x26x64xbf16, #tpu.memory_space<vmem>>, vector<1x16x64xbf16>,
    %cst_52 = arith.constant 0.000000e+00 : f32
    %49 = vector.broadcast %cst_52 : f32 to vector<16x32xf32>
    %c0_53 = arith.constant 0 : index
    %c6_54 = arith.constant 6 : index
    %c0_55 = arith.constant 0 : index
    %50 = vector.load %arg8[%c0_53, %c6_54, %c0_55] : memref<1x26x64xbf16, #tpu.memory_space<vmem>>, vector<1x16x64xbf16>
    %51 = vector.shape_cast %50 : vector<1x16x64xbf16> to vector<16x64xbf16>
    %c0_56 = arith.constant 0 : index
    %c0_57 = arith.constant 0 : index
    %c0_58 = arith.constant 0 : index
    %52 = vector.load %arg4[%c0_56, %c0_57, %c0_58] : memref<5x64x32xbf16, #tpu.memory_space<vmem>>, vector<1x64x32xbf16>
    %53 = vector.shape_cast %52 : vector<1x64x32xbf16> to vector<64x32xbf16>
    %cst_59 = arith.constant dense<0.000000e+00> : vector<16x32xf32>
    %54 = tpu.matmul %51, %53, %cst_59 {dimension_numbers = #tpu.dot_dimension_numbers<[1], [0], [0], [1], [0, 0, 1, 1], [], []>} : vector<16x64xbf16>, vector<64x32xbf16>, vector<16x32xf32> -> vector<16x32xf32>
    %55 = arith.addf %49, %54 : vector<16x32xf32>
    %c0_60 = arith.constant 0 : index
    %c7_61 = arith.constant 7 : index
    %c0_62 = arith.constant 0 : index
    %56 = vector.load %arg8[%c0_60, %c7_61, %c0_62] : memref<1x26x64xbf16, #tpu.memory_space<vmem>>, vector<1x16x64xbf16>
    %57 = vector.shape_cast %56 : vector<1x16x64xbf16> to vector<16x64xbf16>
    %c1_63 = arith.constant 1 : index
    %c0_64 = arith.constant 0 : index
    %c0_65 = arith.constant 0 : index
    %58 = vector.load %arg4[%c1_63, %c0_64, %c0_65] : memref<5x64x32xbf16, #tpu.memory_space<vmem>>, vector<1x64x32xbf16>
    %59 = vector.shape_cast %58 : vector<1x64x32xbf16> to vector<64x32xbf16>
    %cst_66 = arith.constant dense<0.000000e+00> : vector<16x32xf32>
    %60 = tpu.matmul %57, %59, %cst_66 {dimension_numbers = #tpu.dot_dimension_numbers<[1], [0], [0], [1], [0, 0, 1, 1], [], []>} : vector<16x64xbf16>, vector<64x32xbf16>, vector<16x32xf32> -> vector<16x32xf32>
    %61 = arith.addf %55, %60 : vector<16x32xf32>
    %c0_67 = arith.constant 0 : index
    %c8_68 = arith.constant 8 : index
    %c0_69 = arith.constant 0 : index
    %62 = vector.load %arg8[%c0_67, %c8_68, %c0_69] : memref<1x26x64xbf16, #tpu.memory_space<vmem>>, vector<1x16x64xbf16>
    %63 = vector.shape_cast %62 : vector<1x16x64xbf16> to vector<16x64xbf16>
    %c2_70 = arith.constant 2 : index
    %c0_71 = arith.constant 0 : index
    %c0_72 = arith.constant 0 : index
    %64 = vector.load %arg4[%c2_70, %c0_71, %c0_72] : memref<5x64x32xbf16, #tpu.memory_space<vmem>>, vector<1x64x32xbf16>
    %65 = vector.shape_cast %64 : vector<1x64x32xbf16> to vector<64x32xbf16>
    %cst_73 = arith.constant dense<0.000000e+00> : vector<16x32xf32>
    %66 = tpu.matmul %63, %65, %cst_73 {dimension_numbers = #tpu.dot_dimension_numbers<[1], [0], [0], [1], [0, 0, 1, 1], [], []>} : vector<16x64xbf16>, vector<64x32xbf16>, vector<16x32xf32> -> vector<16x32xf32>
    %67 = arith.addf %61, %66 : vector<16x32xf32>
    %c0_74 = arith.constant 0 : index
    %c9_75 = arith.constant 9 : index
    %c0_76 = arith.constant 0 : index
    %68 = vector.load %arg8[%c0_74, %c9_75, %c0_76] : memref<1x26x64xbf16, #tpu.memory_space<vmem>>, vector<1x16x64xbf16>
    %69 = vector.shape_cast %68 : vector<1x16x64xbf16> to vector<16x64xbf16>
    %c3_77 = arith.constant 3 : index
    %c0_78 = arith.constant 0 : index
    %c0_79 = arith.constant 0 : index
    %70 = vector.load %arg4[%c3_77, %c0_78, %c0_79] : memref<5x64x32xbf16, #tpu.memory_space<vmem>>, vector<1x64x32xbf16>
    %71 = vector.shape_cast %70 : vector<1x64x32xbf16> to vector<64x32xbf16>
    %cst_80 = arith.constant dense<0.000000e+00> : vector<16x32xf32>
    %72 = tpu.matmul %69, %71, %cst_80 {dimension_numbers = #tpu.dot_dimension_numbers<[1], [0], [0], [1], [0, 0, 1, 1], [], []>} : vector<16x64xbf16>, vector<64x32xbf16>, vector<16x32xf32> -> vector<16x32xf32>
    %73 = arith.addf %67, %72 : vector<16x32xf32>
    %c0_81 = arith.constant 0 : index
    %c10_82 = arith.constant 10 : index
    %c0_83 = arith.constant 0 : index
    %74 = vector.load %arg8[%c0_81, %c10_82, %c0_83] : memref<1x26x64xbf16, #tpu.memory_space<vmem>>, vector<1x16x64xbf16>
    %75 = vector.shape_cast %74 : vector<1x16x64xbf16> to vector<16x64xbf16>
    %c4_84 = arith.constant 4 : index
    %c0_85 = arith.constant 0 : index
    %c0_86 = arith.constant 0 : index
    %76 = vector.load %arg4[%c4_84, %c0_85, %c0_86] : memref<5x64x32xbf16, #tpu.memory_space<vmem>>, vector<1x64x32xbf16>
    %77 = vector.shape_cast %76 : vector<1x64x32xbf16> to vector<64x32xbf16>
    %cst_87 = arith.constant dense<0.000000e+00> : vector<16x32xf32>
    %78 = tpu.matmul %75, %77, %cst_87 {dimension_numbers = #tpu.dot_dimension_numbers<[1], [0], [0], [1], [0, 0, 1, 1], [], []>} : vector<16x64xbf16>, vector<64x32xbf16>, vector<16x32xf32> -> vector<16x32xf32>
    %79 = arith.addf %73, %78 : vector<16x32xf32>
    %c0_88 = arith.constant 0 : index
    %c0_89 = arith.constant 0 : index
    %80 = vector.load %arg5[%c0_88, %c0_89] : memref<1x32xf32, #tpu.memory_space<vmem>>, vector<1x32xf32>
    %81 = vector.broadcast %80 : vector<1x32xf32> to vector<16x32xf32>
    %82 = arith.addf %79, %81 : vector<16x32xf32>
    %cst_90 = arith.constant 0.000000e+00 : f32
    %83 = vector.broadcast %cst_90 : f32 to vector<16x32xf32>
    %84 = arith.maximumf %82, %83 : vector<16x32xf32>
    %85 = vector.shape_cast %84 : vector<16x32xf32> to vector<1x16x32xf32>
    %c0_91 = arith.constant 0 : index
    %c0_92 = arith.constant 0 : index
    %c0_93 = arith.constant 0 : index
    %86 = vector.load %arg6[%c0_91, %c0_92, %c0_93] : memref<1x16x32xf32, #tpu.memory_space<vmem>>, vector<1x16x32xf32>
    tpu.vector_store %arg6[%c0_91, %c0_92, %c0_93], %85 {strides = array<i32>} : memref<1x16x32xf32, #tpu.memory_space<vmem>>, vector<1x16x32xf32>,
    return
  }
  func.func @transform_0(%arg0: i32) -> (i32, i32, i32) {
    %c0_i32 = arith.constant 0 : i32
    %c0_i32_0 = arith.constant 0 : i32
    %c0_i32_1 = arith.constant 0 : i32
    return %arg0, %c0_i32, %c0_i32_0 : i32, i32, i32
  }
  func.func @transform_1(%arg0: i32) -> (i32, i32, i32) {
    %c0_i32 = arith.constant 0 : i32
    %c0_i32_0 = arith.constant 0 : i32
    %c0_i32_1 = arith.constant 0 : i32
    %c0_i32_2 = arith.constant 0 : i32
    return %c0_i32, %c0_i32_0, %c0_i32_1 : i32, i32, i32
  }
  func.func @transform_2(%arg0: i32) -> (i32, i32) {
    %c0_i32 = arith.constant 0 : i32
    %c0_i32_0 = arith.constant 0 : i32
    %c0_i32_1 = arith.constant 0 : i32
    return %c0_i32, %c0_i32_0 : i32, i32
  }
  func.func @transform_3(%arg0: i32) -> (i32, i32, i32) {
    %c0_i32 = arith.constant 0 : i32
    %c0_i32_0 = arith.constant 0 : i32
    %c0_i32_1 = arith.constant 0 : i32
    %c0_i32_2 = arith.constant 0 : i32
    return %c0_i32, %c0_i32_0, %c0_i32_1 : i32, i32, i32
  }
  func.func @transform_4(%arg0: i32) -> (i32, i32) {
    %c0_i32 = arith.constant 0 : i32
    %c0_i32_0 = arith.constant 0 : i32
    %c0_i32_1 = arith.constant 0 : i32
    return %c0_i32, %c0_i32_0 : i32, i32
  }
  func.func @transform_5(%arg0: i32) -> (i32, i32, i32) {
    %c0_i32 = arith.constant 0 : i32
    %c0_i32_0 = arith.constant 0 : i32
    %c0_i32_1 = arith.constant 0 : i32
    return %arg0, %c0_i32, %c0_i32_0 : i32, i32, i32
  }
}

</mosaic_0001>

<llo_original>
// kernel: tpu_custom_call.1
$region0: #{tpu_custom_call.1}
  #allocation0 [shape = 'u32[]', space=smem, size = 0x4, offset = 0x4, fixed_abs, tag = 'smem constant byte address 0x4 - core index']
  #allocation1 [shape = 'u32[144,128]{1,0:T(1,128)}', space=vmem, size = 0x12000, scoped, tag = 'internal scratch']
  #allocation2 [shape = 'bf16[1,26,32]{2,1,0:T(8,128)(2,1)}', space=vmem, size = 0x2000, scoped, tag = 'scratch operand']
  #allocation3 [shape = 'bf16[1,26,64]{2,1,0:T(8,128)(2,1)}', space=vmem, size = 0x2000, scoped, tag = 'scratch operand']
  %s0 = inlined_call_operand.vmem [shape: bf16[2,16,32], index: 0, kind: input, shape index: {}]
  %s1 = inlined_call_operand.vmem [shape: bf16[5,32,64], index: 1, kind: input, shape index: {}]
  %s2 = inlined_call_operand.vmem [shape: f32[1,64], index: 2, kind: input, shape index: {}]
  %s3 = inlined_call_operand.vmem [shape: bf16[5,64,32], index: 3, kind: input, shape index: {}]
  %s4 = inlined_call_operand.vmem [shape: f32[1,32], index: 4, kind: input, shape index: {}]
  %s5 = inlined_call_operand.hbm [shape: f32[2,16,32], index: 5, kind: output, shape index: {}]
  %s6 = sld [smem:[#allocation0]]
  $region53: #{tpu_custom_call.1} parent=0
    _
  %s8 = ssub.s32 1, %s6
  %s9 = scalar_select 0, %s8, %s6
  $region1: #{tpu_custom_call.1} parent=0
    #allocation4 [shape = 'u8[16384]{0}', space=vmem, size = 0x4000, scoped, tag = 'output window, operand 0']
    #allocation5 [shape = 's32[2]{0}', space=sflag, size = 0x8, scoped, tag = 'scoped memory for tpu_custom_call.1']
    %10 = vsyncpa [#allocation5], 0
    %s11 = scalar_lea.sflag [#allocation5], 1
    %12 = vsyncpa %s11, 0
    loop: start=0, step=1, limit=4
    $region2: #{tpu_custom_call.1} parent=1 // loop_pre_header
      _
    $region3: #{tpu_custom_call.1} parent=1 // loop_header
      %s14 = sphi 0, %s18
      %p15 = scmp.ge.s32.totalorder %s14, 4
      %s24 = sphi 0, %s26
      %s27 = sphi 0, %s24
      %s28 = sphi 0, %s27
      %s44 = sphi 0, %s28
      %s48 = sphi 0, %s48
      %s50 = sphi 0, %s48
      %s51 = sphi 0, %s50
      %s65 = sphi 0, %s51
      %s69 = sphi 0, %s69
      %s71 = sphi 0, %s69
      %s72 = sphi 0, %s71
      %s86 = sphi 0, %s72
      %s90 = sphi 0, %s90
      %s92 = sphi 0, %s90
      %s93 = sphi 0, %s92
      %s107 = sphi 0, %s93
      %s111 = sphi 0, %s111
      %s113 = sphi 0, %s111
      %s114 = sphi 0, %s113
      %s128 = sphi 0, %s114
      %s134 = sphi 0, %s136
      %s137 = sphi 0, %s134
      %s138 = sphi 0, %s137
      %s154 = sphi 0, %s138
    $region4: #{tpu_custom_call.1} parent=1 // loop_header_branch
      %17 = sbr.rel (%p15) target = $region8
    $region5: #{tpu_custom_call.1} parent=1 // loop_body
      %s19 = ssub.s32 %s14, 1
      %s20 = ssub.s32 %s14, 2
      %s21 = sadd.s32 %s14, 1
      %s22 = ssub.s32 %s14, %s21
      %p23 = scmp.eq.s32.totalorder %s22, 0
      %s25 = sadd.s32 %s24, 1
      %s26 = scalar_select %p23, %s24, %s25
      %p29 = pneg %p23
      %p30 = scmp.eq.s32.totalorder %s14, 1
      %p31 = por %p29, %p30
      %p32 = scmp.ne.s32.totalorder %s24, %s27
      %p33 = scmp.eq.s32.totalorder %s14, 0
      %p34 = por %p32, %p33
      %p35 = scmp.ne.s32.totalorder %s24, %s27
      %p36 = scmp.eq.s32.totalorder %s19, 1
      %p37 = por %p35, %p36
      %p38 = scmp.ne.s32.totalorder %s27, %s28
      %p39 = scmp.eq.s32.totalorder %s19, 0
      %p40 = por %p38, %p39
      %p41 = scmp.ne.s32.totalorder %s27, %s28
      %p42 = scmp.eq.s32.totalorder %s20, 1
      %p43 = por %p41, %p42
      %p45 = scmp.ne.s32.totalorder %s28, %s44
      %p46 = scmp.eq.s32.totalorder %s20, 0
      %p47 = por %p45, %p46
      %s49 = sadd.s32 %s48, 1
      %p52 = scmp.eq.s32.totalorder %s14, 1
      %p53 = scmp.ne.s32.totalorder %s48, %s50
      %p54 = scmp.eq.s32.totalorder %s14, 0
      %p55 = por %p53, %p54
      %p56 = scmp.ne.s32.totalorder %s48, %s50
      %p57 = scmp.eq.s32.totalorder %s19, 1
      %p58 = por %p56, %p57
      %p59 = scmp.ne.s32.totalorder %s50, %s51
      %p60 = scmp.eq.s32.totalorder %s19, 0
      %p61 = por %p59, %p60
      %p62 = scmp.ne.s32.totalorder %s50, %s51
      %p63 = scmp.eq.s32.totalorder %s20, 1
      %p64 = por %p62, %p63
      %p66 = scmp.ne.s32.totalorder %s51, %s65
      %p67 = scmp.eq.s32.totalorder %s20, 0
      %p68 = por %p66, %p67
      %s70 = sadd.s32 %s69, 1
      %p73 = scmp.eq.s32.totalorder %s14, 1
      %p74 = scmp.ne.s32.totalorder %s69, %s71
      %p75 = scmp.eq.s32.totalorder %s14, 0
      %p76 = por %p74, %p75
      %p77 = scmp.ne.s32.totalorder %s69, %s71
      %p78 = scmp.eq.s32.totalorder %s19, 1
      %p79 = por %p77, %p78
      %p80 = scmp.ne.s32.totalorder %s71, %s72
      %p81 = scmp.eq.s32.totalorder %s19, 0
      %p82 = por %p80, %p81
      %p83 = scmp.ne.s32.totalorder %s71, %s72
      %p84 = scmp.eq.s32.totalorder %s20, 1
      %p85 = por %p83, %p84
      %p87 = scmp.ne.s32.totalorder %s72, %s86
      %p88 = scmp.eq.s32.totalorder %s20, 0
      %p89 = por %p87, %p88
      %s91 = sadd.s32 %s90, 1
      %p94 = scmp.eq.s32.totalorder %s14, 1
      %p95 = scmp.ne.s32.totalorder %s90, %s92
      %p96 = scmp.eq.s32.totalorder %s14, 0
      %p97 = por %p95, %p96
      %p98 = scmp.ne.s32.totalorder %s90, %s92
      %p99 = scmp.eq.s32.totalorder %s19, 1
      %p100 = por %p98, %p99
      %p101 = scmp.ne.s32.totalorder %s92, %s93
      %p102 = scmp.eq.s32.totalorder %s19, 0
      %p103 = por %p101, %p102
      %p104 = scmp.ne.s32.totalorder %s92, %s93
      %p105 = scmp.eq.s32.totalorder %s20, 1
      %p106 = por %p104, %p105
      %p108 = scmp.ne.s32.totalorder %s93, %s107
      %p109 = scmp.eq.s32.totalorder %s20, 0
      %p110 = por %p108, %p109
      %s112 = sadd.s32 %s111, 1
      %p115 = scmp.eq.s32.totalorder %s14, 1
      %p116 = scmp.ne.s32.totalorder %s111, %s113
      %p117 = scmp.eq.s32.totalorder %s14, 0
      %p118 = por %p116, %p117
      %p119 = scmp.ne.s32.totalorder %s111, %s113
      %p120 = scmp.eq.s32.totalorder %s19, 1
      %p121 = por %p119, %p120
      %p122 = scmp.ne.s32.totalorder %s113, %s114
      %p123 = scmp.eq.s32.totalorder %s19, 0
      %p124 = por %p122, %p123
      %p125 = scmp.ne.s32.totalorder %s113, %s114
      %p126 = scmp.eq.s32.totalorder %s20, 1
      %p127 = por %p125, %p126
      %p129 = scmp.ne.s32.totalorder %s114, %s128
      %p130 = scmp.eq.s32.totalorder %s20, 0
      %p131 = por %p129, %p130
      %s132 = ssub.s32 %s14, %s21
      %p133 = scmp.eq.s32.totalorder %s132, 0
      %s135 = sadd.s32 %s134, 1
      %s136 = scalar_select %p133, %s134, %s135
      %p139 = pneg %p133
      %p140 = scmp.eq.s32.totalorder %s14, 1
      %p141 = por %p139, %p140
      %p142 = scmp.ne.s32.totalorder %s134, %s137
      %p143 = scmp.eq.s32.totalorder %s14, 0
      %p144 = por %p142, %p143
      %p145 = scmp.ne.s32.totalorder %s134, %s137
      %p146 = scmp.eq.s32.totalorder %s19, 1
      %p147 = por %p145, %p146
      %p148 = scmp.ne.s32.totalorder %s137, %s138
      %p149 = scmp.eq.s32.totalorder %s19, 0
      %p150 = por %p148, %p149
      %p151 = scmp.ne.s32.totalorder %s137, %s138
      %p152 = scmp.eq.s32.totalorder %s20, 1
      %p153 = por %p151, %p152
      %p155 = scmp.ne.s32.totalorder %s138, %s154
      %p156 = scmp.eq.s32.totalorder %s20, 0
      %p157 = por %p155, %p156
      %p158 = scmp.le.s32.totalorder 1, %s14
      %p159 = scmp.lt.s32.totalorder %s14, 3
      %p160 = pnand %p158, %p159
      %p161 = pneg %p160
      // Predicated region
      $region9: #{tpu_custom_call.1} parent=5 // pred_check
        _
      $region10: #{tpu_custom_call.1} parent=5 // pred_check_branch
        %163 = sbr.rel (%p160) target = $region12
      $region11: #{tpu_custom_call.1} parent=5 // pred_region
        %s164 = ssub.s32 %s14, 1
        // Predicated region
        $region13: #{tpu_custom_call.1} parent=11 // pred_check
          %p165 = pneg %p61
        $region14: #{tpu_custom_call.1} parent=11 // pred_check_branch
          %167 = sbr.rel (%p165) target = $region16
        $region15: #{tpu_custom_call.1} parent=11 // pred_region
          _
        $region16: #{tpu_custom_call.1} parent=11 // pred_fallthru
          _
        // Predicated region
        $region17: #{tpu_custom_call.1} parent=11 // pred_check
          %p168 = pneg %p82
        $region18: #{tpu_custom_call.1} parent=11 // pred_check_branch
          %170 = sbr.rel (%p168) target = $region20
        $region19: #{tpu_custom_call.1} parent=11 // pred_region
          _
        $region20: #{tpu_custom_call.1} parent=11 // pred_fallthru
          _
        // Predicated region
        $region21: #{tpu_custom_call.1} parent=11 // pred_check
          %p171 = pneg %p103
        $region22: #{tpu_custom_call.1} parent=11 // pred_check_branch
          %173 = sbr.rel (%p171) target = $region24
        $region23: #{tpu_custom_call.1} parent=11 // pred_region
          _
        $region24: #{tpu_custom_call.1} parent=11 // pred_fallthru
          _
        // Predicated region
        $region25: #{tpu_custom_call.1} parent=11 // pred_check
          %p174 = pneg %p124
        $region26: #{tpu_custom_call.1} parent=11 // pred_check_branch
          %176 = sbr.rel (%p174) target = $region28
        $region27: #{tpu_custom_call.1} parent=11 // pred_region
          _
        $region28: #{tpu_custom_call.1} parent=11 // pred_fallthru
          _
      $region12: #{tpu_custom_call.1} parent=5 // pred_fallthru
        _
      %p177 = scmp.lt.s32.totalorder %s14, 2
      // Predicated region
      $region29: #{tpu_custom_call.1} parent=5 // pred_check
        %p178 = pneg %p177
      $region30: #{tpu_custom_call.1} parent=5 // pred_check_branch
        %180 = sbr.rel (%p178) target = $region32
      $region31: #{tpu_custom_call.1} parent=5 // pred_region
        // Predicated region
        $region33: #{tpu_custom_call.1} parent=31 // pred_check
          %p181 = pneg %p34
        $region34: #{tpu_custom_call.1} parent=31 // pred_check_branch
          %183 = sbr.rel (%p181) target = $region36
        $region35: #{tpu_custom_call.1} parent=31 // pred_region
          %p184 = scmp.lt.s32.totalorder %s14, 1
          %s185 = scalar_select %p184, %s14, 1
          %s186 = smul.addr %s185, 2
          %s187 = smul.addr %s186, 4
          %s188 = scalar_lea.vmem %s0, %s187
        $region36: #{tpu_custom_call.1} parent=31 // pred_fallthru
          _
      $region32: #{tpu_custom_call.1} parent=5 // pred_fallthru
        _
      %p189 = scmp.le.s32.totalorder 1, %s14
      %p190 = scmp.lt.s32.totalorder %s14, 3
      %p191 = pnand %p189, %p190
      %p192 = pneg %p191
      // Predicated region
      $region37: #{tpu_custom_call.1} parent=5 // pred_check
        _
      $region38: #{tpu_custom_call.1} parent=5 // pred_check_branch
        %194 = sbr.rel (%p191) target = $region40
      $region39: #{tpu_custom_call.1} parent=5 // pred_region
        %s195 = ssub.s32 %s14, 1
        %p196 = scmp.lt.s32.totalorder %s19, 1
        %s197 = scalar_select %p196, %s19, 1
        %s198 = smul.addr %s197, 2
        %s199 = smul.addr %s198, 4
        %s200 = scalar_lea.vmem %s0, %s199
        %p201 = pneg %p40
        %p202 = pneg %p37
        %p203 = pneg %p61
        %p204 = pneg %p58
        %p205 = pneg %p82
        %p206 = pneg %p79
        %p207 = pneg %p103
        %p208 = pneg %p100
        %p209 = pneg %p124
        %p210 = pneg %p121
        %p211 = pneg %p150
        %p212 = pneg %p147
        %s213 = sand.u32 %s137, 1
        %s214 = scalar_lea.sflag [#allocation5], %s213
        %s215 = sand.u32 %s137, 1
        %s216 = smul.addr %s215, 16
        %s217 = scalar_lea.vmem [#allocation4], %s216
        %p218 = scmp.lt.s32.totalorder %s19, 1
        %s219 = scalar_select %p218, %s19, 1
        %s220 = smul.addr %s219, 2
        %s221 = smul.addr %s220, 4
        %s222 = scalar_lea.vmem %s0, %s221
        %vm224 = vcmask 257027
        %225 = vst.msk [vmem:[#allocation2] sm:$0x8] %vm224, 0
        %vm226 = vcmask 253952
        %227 = vst.msk [vmem:[#allocation2 + $0xc] sm:$0x1] %vm226, 0
        %vm228 = vcmask 519171
        %229 = vst.msk [vmem:[#allocation3] sm:$0x8] %vm228, 0
        %vm230 = vcmask 516096
        %231 = vst.msk [vmem:[#allocation3 + $0xc] sm:$0x1] %vm230, 0
        %v232 = vld [vmem:[%s222] sm:$0xf]
        %v233 = vld [vmem:[%s222 + $0x4] sm:$0xf]
        %vm234 = vcmask 257024
        %235 = vst.msk [vmem:[#allocation2 + $0x4] sm:$0xf] %vm234, %v232
        %236 = vst.msk [vmem:[#allocation2 + $0x8] sm:$0xf] %vm234, %v233
        %v237 = vld [vmem:[#allocation2] sm:$0x8]
        %v238 = vld [vmem:[#allocation2 + $0x4] sm:$0xf]
        %v239 = vld [vmem:[#allocation2 + $0x8] sm:$0x7]
        %v240 = vld [vmem:[%s1] sm:$0xf]
        %v241 = vld [vmem:[%s1 + $0x4] sm:$0xf]
        %v242 = vld [vmem:[%s1 + $0x8] sm:$0xf]
        %v243 = vld [vmem:[%s1 + $0xc] sm:$0xf]
        %v244 = vld [vmem:[#allocation2 + $0x8] sm:$0xf]
        %s245 = scalar_lea.vmem %s1, 16
        %v246 = vld [vmem:[%s245] sm:$0xf]
        %v247 = vld [vmem:[%s245 + $0x4] sm:$0xf]
        %v248 = vld [vmem:[%s245 + $0x8] sm:$0xf]
        %v249 = vld [vmem:[%s245 + $0xc] sm:$0xf]
        %v253 = vunpack.c.l.b16 %v237
        %v254 = vunpack.c.l.b16 %v238
        %v255 = vunpack.c.l.b16 %v244
        %v256 = vpack.c.b16 %v254, %v253
        %v257 = vpack.c.b16 %v255, %v255
        %vm258 = vsmask.f32 4352
        %v260 = vshrl.u32 %v256, 16
        %v262 = vrot.slane %v260, 3
        %v263 = vshll.u32 %v256, 16
        %v265 = vrot.slane %v263, 4
        %v266 = vor.u32 %v262, %v265
        %v268 = vshrl.u32 %v257, 16
        %v270 = vrot.slane %v268, 3
        %v271 = vshll.u32 %v257, 16
        %v273 = vrot.slane %v271, 4
        %v274 = vor.u32 %v270, %v273
        %v275 = vsel %vm258, %v266, %v274
        %v280 = vunpack.c.l.b16 %v246
        %v281 = vunpack.c.l.b16 %v247
        %v282 = vunpack.c.l.b16 %v248
        %v283 = vunpack.c.l.b16 %v249
        %v284 = vpack.c.b16 %v281, %v280
        %v285 = vpack.c.b16 %v283, %v282
        %vm288 = vcmask 261120
        %v290 = vsel %vm288, %v275, 0
        %292 = vmatprep.subr.bf16.mxu0 0
        %293 = vmatpush1.bf16.msra.mxu0 %v284
        %294 = vmatprep.subr.bf16.mxu0 0
        %295 = vmatpush1.bf16.msra.mxu0 %v285
        %296 = vmatprep.subr.bf16.mxu0 0
        %297 = vmatpush1.bf16.msra.mxu0 0
        %298 = vmatprep.subr.bf16.mxu0 0
        %299 = vmatpush1.bf16.msra.mxu0 0
        %300 = vmatprep.subr.bf16.mxu0 0
        %301 = vmatpush1.bf16.msra.mxu0 0
        %302 = vmatprep.subr.bf16.mxu0 0
        %303 = vmatpush1.bf16.msra.mxu0 0
        %304 = vmatprep.subr.bf16.mxu0 0
        %305 = vmatpush1.bf16.msra.mxu0 0
        %306 = vmatprep.subr.bf16.mxu0 0
        %307 = vmatpush1.bf16.msra.mxu0 0
        %308 = vmatprep.subr.bf16.mxu0 0
        %309 = vmatpush1.bf16.msra.mxu0 0
        %310 = vmatprep.subr.bf16.mxu0 0
        %311 = vmatpush1.bf16.msra.mxu0 0
        %312 = vmatprep.subr.bf16.mxu0 0
        %313 = vmatpush1.bf16.msra.mxu0 0
        %314 = vmatprep.subr.bf16.mxu0 0
        %315 = vmatpush1.bf16.msra.mxu0 0
        %316 = vmatprep.subr.bf16.mxu0 0
        %317 = vmatpush1.bf16.msra.mxu0 0
        %318 = vmatprep.subr.bf16.mxu0 0
        %319 = vmatpush1.bf16.msra.mxu0 0
        %320 = vmatprep.subr.bf16.mxu0 0
        %321 = vmatpush1.bf16.msra.mxu0 0
        %322 = vmatprep.subr.bf16.mxu0 0
        %323 = vmatpush1.bf16.msra.mxu0 0
        %324 = vmatprep.mubr.bf16.mxu0 0
        %325 = vmatmul.mubr.bf16.gmra.mrb[0].mxu0 %v290
        %v326 = vpop.f32.mrb[0].mxu0
        %v327 = vadd.f32 0.0, %v326
        %v328 = vpop.f32.mrb[0].mxu0
        %v329 = vpop.f32.mrb[0].mxu0
        %v330 = vadd.f32 0.0, %v329
        %v331 = vpop.f32.mrb[0].mxu0
        %332 = vdwg.mxu0
        %v334 = vunpack.c.l.b16 %v239
        %v335 = vpack.c.b16 %v334, %v334
        %vm336 = vcmask 1044480
        %v337 = vrot.slane %v256, 3
        %v338 = vrot.slane %v335, 3
        %v339 = vsel %vm336, %v337, %v338
        %v344 = vunpack.c.l.b16 %v240
        %v345 = vunpack.c.l.b16 %v241
        %v346 = vunpack.c.l.b16 %v242
        %v347 = vunpack.c.l.b16 %v243
        %v348 = vpack.c.b16 %v345, %v344
        %v349 = vpack.c.b16 %v347, %v346
        %v353 = vsel %vm288, %v339, 0
        %355 = vmatprep.subr.bf16.mxu0 0
        %356 = vmatpush1.bf16.msra.mxu0 %v348
        %357 = vmatprep.subr.bf16.mxu0 0
        %358 = vmatpush1.bf16.msra.mxu0 %v349
        %359 = vmatprep.subr.bf16.mxu0 0
        %360 = vmatpush1.bf16.msra.mxu0 0
        %361 = vmatprep.subr.bf16.mxu0 0
        %362 = vmatpush1.bf16.msra.mxu0 0
        %363 = vmatprep.subr.bf16.mxu0 0
        %364 = vmatpush1.bf16.msra.mxu0 0
        %365 = vmatprep.subr.bf16.mxu0 0
        %366 = vmatpush1.bf16.msra.mxu0 0
        %367 = vmatprep.subr.bf16.mxu0 0
        %368 = vmatpush1.bf16.msra.mxu0 0
        %369 = vmatprep.subr.bf16.mxu0 0
        %370 = vmatpush1.bf16.msra.mxu0 0
        %371 = vmatprep.subr.bf16.mxu0 0
        %372 = vmatpush1.bf16.msra.mxu0 0
        %373 = vmatprep.subr.bf16.mxu0 0
        %374 = vmatpush1.bf16.msra.mxu0 0
        %375 = vmatprep.subr.bf16.mxu0 0
        %376 = vmatpush1.bf16.msra.mxu0 0
        %377 = vmatprep.subr.bf16.mxu0 0
        %378 = vmatpush1.bf16.msra.mxu0 0
        %379 = vmatprep.subr.bf16.mxu0 0
        %380 = vmatpush1.bf16.msra.mxu0 0
        %381 = vmatprep.subr.bf16.mxu0 0
        %382 = vmatpush1.bf16.msra.mxu0 0
        %383 = vmatprep.subr.bf16.mxu0 0
        %384 = vmatpush1.bf16.msra.mxu0 0
        %385 = vmatprep.subr.bf16.mxu0 0
        %386 = vmatpush1.bf16.msra.mxu0 0
        %387 = vmatprep.mubr.bf16.mxu0 0
        %388 = vmatmul.mubr.bf16.gmra.mrb[0].mxu0 %v353
        %v389 = vpop.f32.mrb[0].mxu0
        %v390 = vadd.f32 %v327, %v389
        %v391 = vpop.f32.mrb[0].mxu0
        %v392 = vpop.f32.mrb[0].mxu0
        %v393 = vadd.f32 %v330, %v392
        %v394 = vpop.f32.mrb[0].mxu0
        %395 = vdwg.mxu0
        %s396 = scalar_lea.vmem %s1, 32
        %v397 = vld [vmem:[%s396] sm:$0xf]
        %v398 = vld [vmem:[%s396 + $0x4] sm:$0xf]
        %v399 = vld [vmem:[%s396 + $0x8] sm:$0xf]
        %v400 = vld [vmem:[%s396 + $0xc] sm:$0xf]
        %v401 = vpack.c.b16 %v255, %v254
        %v406 = vunpack.c.l.b16 %v397
        %v407 = vunpack.c.l.b16 %v398
        %v408 = vunpack.c.l.b16 %v399
        %v409 = vunpack.c.l.b16 %v400
        %v410 = vpack.c.b16 %v407, %v406
        %v411 = vpack.c.b16 %v409, %v408
        %v415 = vsel %vm288, %v401, 0
        %417 = vmatprep.subr.bf16.mxu0 0
        %418 = vmatpush1.bf16.msra.mxu0 %v410
        %419 = vmatprep.subr.bf16.mxu0 0
        %420 = vmatpush1.bf16.msra.mxu0 %v411
        %421 = vmatprep.subr.bf16.mxu0 0
        %422 = vmatpush1.bf16.msra.mxu0 0
        %423 = vmatprep.subr.bf16.mxu0 0
        %424 = vmatpush1.bf16.msra.mxu0 0
        %425 = vmatprep.subr.bf16.mxu0 0
        %426 = vmatpush1.bf16.msra.mxu0 0
        %427 = vmatprep.subr.bf16.mxu0 0
        %428 = vmatpush1.bf16.msra.mxu0 0
        %429 = vmatprep.subr.bf16.mxu0 0
        %430 = vmatpush1.bf16.msra.mxu0 0
        %431 = vmatprep.subr.bf16.mxu0 0
        %432 = vmatpush1.bf16.msra.mxu0 0
        %433 = vmatprep.subr.bf16.mxu0 0
        %434 = vmatpush1.bf16.msra.mxu0 0
        %435 = vmatprep.subr.bf16.mxu0 0
        %436 = vmatpush1.bf16.msra.mxu0 0
        %437 = vmatprep.subr.bf16.mxu0 0
        %438 = vmatpush1.bf16.msra.mxu0 0
        %439 = vmatprep.subr.bf16.mxu0 0
        %440 = vmatpush1.bf16.msra.mxu0 0
        %441 = vmatprep.subr.bf16.mxu0 0
        %442 = vmatpush1.bf16.msra.mxu0 0
        %443 = vmatprep.subr.bf16.mxu0 0
        %444 = vmatpush1.bf16.msra.mxu0 0
        %445 = vmatprep.subr.bf16.mxu0 0
        %446 = vmatpush1.bf16.msra.mxu0 0
        %447 = vmatprep.subr.bf16.mxu0 0
        %448 = vmatpush1.bf16.msra.mxu0 0
        %449 = vmatprep.mubr.bf16.mxu0 0
        %450 = vmatmul.mubr.bf16.gmra.mrb[0].mxu0 %v415
        %v451 = vpop.f32.mrb[0].mxu0
        %v452 = vadd.f32 0.0, %v451
        %v453 = vpop.f32.mrb[0].mxu0
        %v454 = vpop.f32.mrb[0].mxu0
        %v455 = vadd.f32 0.0, %v454
        %v456 = vpop.f32.mrb[0].mxu0
        %457 = vdwg.mxu0
        %v458 = vadd.f32 %v390, %v452
        %v459 = vadd.f32 %v393, %v455
        %v460 = vld [vmem:[#allocation2 + $0x4] sm:$0xf]
        %v461 = vld [vmem:[#allocation2 + $0x8] sm:$0xf]
        %v462 = vld [vmem:[#allocation2 + $0xc] sm:$0x1]
        %s463 = scalar_lea.vmem %s1, 48
        %v464 = vld [vmem:[%s463] sm:$0xf]
        %v465 = vld [vmem:[%s463 + $0x4] sm:$0xf]
        %v466 = vld [vmem:[%s463 + $0x8] sm:$0xf]
        %v467 = vld [vmem:[%s463 + $0xc] sm:$0xf]
        %v471 = vunpack.c.l.b16 %v460
        %v472 = vunpack.c.l.b16 %v461
        %v473 = vunpack.c.l.b16 %v462
        %v474 = vpack.c.b16 %v472, %v471
        %v475 = vpack.c.b16 %v473, %v473
        %vm476 = vsmask.f32 7424
        %v478 = vshrl.u32 %v474, 16
        %v480 = vshll.u32 %v474, 16
        %v482 = vrot.slane %v480, 1
        %v483 = vor.u32 %v478, %v482
        %v485 = vshll.u32 %v475, 16
        %v487 = vrot.slane %v485, 1
        %v488 = vsel %vm476, %v483, %v487
        %v493 = vunpack.c.l.b16 %v464
        %v494 = vunpack.c.l.b16 %v465
        %v495 = vunpack.c.l.b16 %v466
        %v496 = vunpack.c.l.b16 %v467
        %v497 = vpack.c.b16 %v494, %v493
        %v498 = vpack.c.b16 %v496, %v495
        %v502 = vsel %vm288, %v488, 0
        %504 = vmatprep.subr.bf16.mxu0 0
        %505 = vmatpush1.bf16.msra.mxu0 %v497
        %506 = vmatprep.subr.bf16.mxu0 0
        %507 = vmatpush1.bf16.msra.mxu0 %v498
        %508 = vmatprep.subr.bf16.mxu0 0
        %509 = vmatpush1.bf16.msra.mxu0 0
        %510 = vmatprep.subr.bf16.mxu0 0
        %511 = vmatpush1.bf16.msra.mxu0 0
        %512 = vmatprep.subr.bf16.mxu0 0
        %513 = vmatpush1.bf16.msra.mxu0 0
        %514 = vmatprep.subr.bf16.mxu0 0
        %515 = vmatpush1.bf16.msra.mxu0 0
        %516 = vmatprep.subr.bf16.mxu0 0
        %517 = vmatpush1.bf16.msra.mxu0 0
        %518 = vmatprep.subr.bf16.mxu0 0
        %519 = vmatpush1.bf16.msra.mxu0 0
        %520 = vmatprep.subr.bf16.mxu0 0
        %521 = vmatpush1.bf16.msra.mxu0 0
        %522 = vmatprep.subr.bf16.mxu0 0
        %523 = vmatpush1.bf16.msra.mxu0 0
        %524 = vmatprep.subr.bf16.mxu0 0
        %525 = vmatpush1.bf16.msra.mxu0 0
        %526 = vmatprep.subr.bf16.mxu0 0
        %527 = vmatpush1.bf16.msra.mxu0 0
        %528 = vmatprep.subr.bf16.mxu0 0
        %529 = vmatpush1.bf16.msra.mxu0 0
        %530 = vmatprep.subr.bf16.mxu0 0
        %531 = vmatpush1.bf16.msra.mxu0 0
        %532 = vmatprep.subr.bf16.mxu0 0
        %533 = vmatpush1.bf16.msra.mxu0 0
        %534 = vmatprep.subr.bf16.mxu0 0
        %535 = vmatpush1.bf16.msra.mxu0 0
        %536 = vmatprep.mubr.bf16.mxu0 0
        %537 = vmatmul.mubr.bf16.gmra.mrb[0].mxu0 %v502
        %v538 = vpop.f32.mrb[0].mxu0
        %v539 = vadd.f32 0.0, %v538
        %v540 = vpop.f32.mrb[0].mxu0
        %v541 = vpop.f32.mrb[0].mxu0
        %v542 = vadd.f32 0.0, %v541
        %v543 = vpop.f32.mrb[0].mxu0
        %544 = vdwg.mxu0
        %v545 = vadd.f32 %v458, %v539
        %v546 = vadd.f32 %v459, %v542
        %v547 = vld [vmem:[#allocation2 + $0x4] sm:$0xe]
        %s548 = scalar_lea.vmem %s1, 64
        %v549 = vld [vmem:[%s548] sm:$0xf]
        %v550 = vld [vmem:[%s548 + $0x4] sm:$0xf]
        %v551 = vld [vmem:[%s548 + $0x8] sm:$0xf]
        %v552 = vld [vmem:[%s548 + $0xc] sm:$0xf]
        %v554 = vunpack.c.l.b16 %v547
        %v555 = vpack.c.b16 %v472, %v554
        %vm556 = vcmask 1046528
        %v557 = vrot.slane %v555, 1
        %v558 = vrot.slane %v475, 1
        %v559 = vsel %vm556, %v557, %v558
        %v564 = vunpack.c.l.b16 %v549
        %v565 = vunpack.c.l.b16 %v550
        %v566 = vunpack.c.l.b16 %v551
        %v567 = vunpack.c.l.b16 %v552
        %v568 = vpack.c.b16 %v565, %v564
        %v569 = vpack.c.b16 %v567, %v566
        %v573 = vsel %vm288, %v559, 0
        %575 = vmatprep.subr.bf16.mxu0 0
        %576 = vmatpush1.bf16.msra.mxu0 %v568
        %577 = vmatprep.subr.bf16.mxu0 0
        %578 = vmatpush1.bf16.msra.mxu0 %v569
        %579 = vmatprep.subr.bf16.mxu0 0
        %580 = vmatpush1.bf16.msra.mxu0 0
        %581 = vmatprep.subr.bf16.mxu0 0
        %582 = vmatpush1.bf16.msra.mxu0 0
        %583 = vmatprep.subr.bf16.mxu0 0
        %584 = vmatpush1.bf16.msra.mxu0 0
        %585 = vmatprep.subr.bf16.mxu0 0
        %586 = vmatpush1.bf16.msra.mxu0 0
        %587 = vmatprep.subr.bf16.mxu0 0
        %588 = vmatpush1.bf16.msra.mxu0 0
        %589 = vmatprep.subr.bf16.mxu0 0
        %590 = vmatpush1.bf16.msra.mxu0 0
        %591 = vmatprep.subr.bf16.mxu0 0
        %592 = vmatpush1.bf16.msra.mxu0 0
        %593 = vmatprep.subr.bf16.mxu0 0
        %594 = vmatpush1.bf16.msra.mxu0 0
        %595 = vmatprep.subr.bf16.mxu0 0
        %596 = vmatpush1.bf16.msra.mxu0 0
        %597 = vmatprep.subr.bf16.mxu0 0
        %598 = vmatpush1.bf16.msra.mxu0 0
        %599 = vmatprep.subr.bf16.mxu0 0
        %600 = vmatpush1.bf16.msra.mxu0 0
        %601 = vmatprep.subr.bf16.mxu0 0
        %602 = vmatpush1.bf16.msra.mxu0 0
        %603 = vmatprep.subr.bf16.mxu0 0
        %604 = vmatpush1.bf16.msra.mxu0 0
        %605 = vmatprep.subr.bf16.mxu0 0
        %606 = vmatpush1.bf16.msra.mxu0 0
        %607 = vmatprep.mubr.bf16.mxu0 0
        %608 = vmatmul.mubr.bf16.gmra.mrb[0].mxu0 %v573
        %v609 = vpop.f32.mrb[0].mxu0
        %v610 = vadd.f32 0.0, %v609
        %v611 = vpop.f32.mrb[0].mxu0
        %v612 = vpop.f32.mrb[0].mxu0
        %v613 = vadd.f32 0.0, %v612
        %v614 = vpop.f32.mrb[0].mxu0
        %615 = vdwg.mxu0
        %v616 = vadd.f32 %v545, %v610
        %v617 = vadd.f32 %v546, %v613
        %v618 = vld [vmem:[%s2] sm:$0x1]
        %v620 = vlaneseq
        %v621 = vshrl.u32 %v620, 7
        %v622 = vsub.s32 0, %v621
        %v623 = vrot.slane %v618, %v622
        %v625 = vadd.f32 %v616, %v623
        %v626 = vadd.f32 %v617, %v623
        %v627 = vmax.f32 %v625, 0.0
        %v628 = vmax.f32 %v626, 0.0
        %v629 = vpack.c.bf16 %v628, %v627
        %v631 = vunpack.c.l.b16 %v629
        %v632 = vunpack.c.h.b16 %v629
        %v633 = vpack.c.b16 %v631, %v631
        %v634 = vpack.c.b16 %v632, %v632
        %vm637 = vcmask 519168
        %638 = vst.msk [vmem:[#allocation3 + $0x4] sm:$0xf] %vm637, %v633
        %639 = vst.msk [vmem:[#allocation3 + $0x8] sm:$0xf] %vm637, %v634
        %v640 = vld [vmem:[#allocation3] sm:$0x8]
        %v641 = vld [vmem:[#allocation3 + $0x4] sm:$0xf]
        %v642 = vld [vmem:[#allocation3 + $0x8] sm:$0x7]
        %v643 = vld [vmem:[%s3] sm:$0xf]
        %v644 = vld [vmem:[%s3 + $0x4] sm:$0xf]
        %v645 = vld [vmem:[%s3 + $0x8] sm:$0xf]
        %v646 = vld [vmem:[%s3 + $0xc] sm:$0xf]
        %v647 = vld [vmem:[%s3 + $0x10] sm:$0xf]
        %v648 = vld [vmem:[%s3 + $0x14] sm:$0xf]
        %v649 = vld [vmem:[%s3 + $0x18] sm:$0xf]
        %v650 = vld [vmem:[%s3 + $0x1c] sm:$0xf]
        %v651 = vld [vmem:[#allocation3 + $0x8] sm:$0xf]
        %s652 = scalar_lea.vmem %s3, 32
        %v653 = vld [vmem:[%s652] sm:$0xf]
        %v654 = vld [vmem:[%s652 + $0x4] sm:$0xf]
        %v655 = vld [vmem:[%s652 + $0x8] sm:$0xf]
        %v656 = vld [vmem:[%s652 + $0xc] sm:$0xf]
        %v657 = vld [vmem:[%s652 + $0x10] sm:$0xf]
        %v658 = vld [vmem:[%s652 + $0x14] sm:$0xf]
        %v659 = vld [vmem:[%s652 + $0x18] sm:$0xf]
        %v660 = vld [vmem:[%s652 + $0x1c] sm:$0xf]
        %v664 = vunpack.c.l.b16 %v640
        %v665 = vunpack.c.l.b16 %v641
        %v666 = vunpack.c.l.b16 %v651
        %v667 = vpack.c.b16 %v665, %v664
        %v668 = vpack.c.b16 %v666, %v666
        %v670 = vshrl.u32 %v667, 16
        %v672 = vrot.slane %v670, 3
        %v673 = vshll.u32 %v667, 16
        %v675 = vrot.slane %v673, 4
        %v676 = vor.u32 %v672, %v675
        %v678 = vshrl.u32 %v668, 16
        %v680 = vrot.slane %v678, 3
        %v681 = vshll.u32 %v668, 16
        %v683 = vrot.slane %v681, 4
        %v684 = vor.u32 %v680, %v683
        %v685 = vsel %vm258, %v676, %v684
        %v694 = vunpack.c.l.b16 %v653
        %v695 = vunpack.c.l.b16 %v654
        %v696 = vunpack.c.l.b16 %v655
        %v697 = vunpack.c.l.b16 %v656
        %v698 = vunpack.c.l.b16 %v657
        %v699 = vunpack.c.l.b16 %v658
        %v700 = vunpack.c.l.b16 %v659
        %v701 = vunpack.c.l.b16 %v660
        %v702 = vpack.c.b16 %v695, %v694
        %v703 = vpack.c.b16 %v697, %v696
        %v704 = vpack.c.b16 %v699, %v698
        %v705 = vpack.c.b16 %v701, %v700
        %vm710 = vcmask 523264
        %v712 = vsel %vm710, %v685, 0
        %714 = vmatprep.subr.bf16.mxu0 0
        %715 = vmatpush1.bf16.msra.mxu0 %v702
        %716 = vmatprep.subr.bf16.mxu0 0
        %717 = vmatpush1.bf16.msra.mxu0 %v703
        %718 = vmatprep.subr.bf16.mxu0 0
        %719 = vmatpush1.bf16.msra.mxu0 %v704
        %720 = vmatprep.subr.bf16.mxu0 0
        %721 = vmatpush1.bf16.msra.mxu0 %v705
        %722 = vmatprep.subr.bf16.mxu0 0
        %723 = vmatpush1.bf16.msra.mxu0 0
        %724 = vmatprep.subr.bf16.mxu0 0
        %725 = vmatpush1.bf16.msra.mxu0 0
        %726 = vmatprep.subr.bf16.mxu0 0
        %727 = vmatpush1.bf16.msra.mxu0 0
        %728 = vmatprep.subr.bf16.mxu0 0
        %729 = vmatpush1.bf16.msra.mxu0 0
        %730 = vmatprep.subr.bf16.mxu0 0
        %731 = vmatpush1.bf16.msra.mxu0 0
        %732 = vmatprep.subr.bf16.mxu0 0
        %733 = vmatpush1.bf16.msra.mxu0 0
        %734 = vmatprep.subr.bf16.mxu0 0
        %735 = vmatpush1.bf16.msra.mxu0 0
        %736 = vmatprep.subr.bf16.mxu0 0
        %737 = vmatpush1.bf16.msra.mxu0 0
        %738 = vmatprep.subr.bf16.mxu0 0
        %739 = vmatpush1.bf16.msra.mxu0 0
        %740 = vmatprep.subr.bf16.mxu0 0
        %741 = vmatpush1.bf16.msra.mxu0 0
        %742 = vmatprep.subr.bf16.mxu0 0
        %743 = vmatpush1.bf16.msra.mxu0 0
        %744 = vmatprep.subr.bf16.mxu0 0
        %745 = vmatpush1.bf16.msra.mxu0 0
        %746 = vmatprep.mubr.bf16.mxu0 0
        %747 = vmatmul.mubr.bf16.gmra.mrb[0].mxu0 %v712
        %v748 = vpop.f32.mrb[0].mxu0
        %v749 = vadd.f32 0.0, %v748
        %v750 = vpop.f32.mrb[0].mxu0
        %v751 = vpop.f32.mrb[0].mxu0
        %v752 = vadd.f32 0.0, %v751
        %v753 = vpop.f32.mrb[0].mxu0
        %754 = vdwg.mxu0
        %v756 = vunpack.c.l.b16 %v642
        %v757 = vpack.c.b16 %v756, %v756
        %v758 = vrot.slane %v667, 3
        %v759 = vrot.slane %v757, 3
        %v760 = vsel %vm336, %v758, %v759
        %v769 = vunpack.c.l.b16 %v643
        %v770 = vunpack.c.l.b16 %v644
        %v771 = vunpack.c.l.b16 %v645
        %v772 = vunpack.c.l.b16 %v646
        %v773 = vunpack.c.l.b16 %v647
        %v774 = vunpack.c.l.b16 %v648
        %v775 = vunpack.c.l.b16 %v649
        %v776 = vunpack.c.l.b16 %v650
        %v777 = vpack.c.b16 %v770, %v769
        %v778 = vpack.c.b16 %v772, %v771
        %v779 = vpack.c.b16 %v774, %v773
        %v780 = vpack.c.b16 %v776, %v775
        %v786 = vsel %vm710, %v760, 0
        %788 = vmatprep.subr.bf16.mxu0 0
        %789 = vmatpush1.bf16.msra.mxu0 %v777
        %790 = vmatprep.subr.bf16.mxu0 0
        %791 = vmatpush1.bf16.msra.mxu0 %v778
        %792 = vmatprep.subr.bf16.mxu0 0
        %793 = vmatpush1.bf16.msra.mxu0 %v779
        %794 = vmatprep.subr.bf16.mxu0 0
        %795 = vmatpush1.bf16.msra.mxu0 %v780
        %796 = vmatprep.subr.bf16.mxu0 0
        %797 = vmatpush1.bf16.msra.mxu0 0
        %798 = vmatprep.subr.bf16.mxu0 0
        %799 = vmatpush1.bf16.msra.mxu0 0
        %800 = vmatprep.subr.bf16.mxu0 0
        %801 = vmatpush1.bf16.msra.mxu0 0
        %802 = vmatprep.subr.bf16.mxu0 0
        %803 = vmatpush1.bf16.msra.mxu0 0
        %804 = vmatprep.subr.bf16.mxu0 0
        %805 = vmatpush1.bf16.msra.mxu0 0
        %806 = vmatprep.subr.bf16.mxu0 0
        %807 = vmatpush1.bf16.msra.mxu0 0
        %808 = vmatprep.subr.bf16.mxu0 0
        %809 = vmatpush1.bf16.msra.mxu0 0
        %810 = vmatprep.subr.bf16.mxu0 0
        %811 = vmatpush1.bf16.msra.mxu0 0
        %812 = vmatprep.subr.bf16.mxu0 0
        %813 = vmatpush1.bf16.msra.mxu0 0
        %814 = vmatprep.subr.bf16.mxu0 0
        %815 = vmatpush1.bf16.msra.mxu0 0
        %816 = vmatprep.subr.bf16.mxu0 0
        %817 = vmatpush1.bf16.msra.mxu0 0
        %818 = vmatprep.subr.bf16.mxu0 0
        %819 = vmatpush1.bf16.msra.mxu0 0
        %820 = vmatprep.mubr.bf16.mxu0 0
        %821 = vmatmul.mubr.bf16.gmra.mrb[0].mxu0 %v786
        %v822 = vpop.f32.mrb[0].mxu0
        %v823 = vadd.f32 %v749, %v822
        %v824 = vpop.f32.mrb[0].mxu0
        %v825 = vpop.f32.mrb[0].mxu0
        %v826 = vadd.f32 %v752, %v825
        %v827 = vpop.f32.mrb[0].mxu0
        %828 = vdwg.mxu0
        %s829 = scalar_lea.vmem %s3, 64
        %v830 = vld [vmem:[%s829] sm:$0xf]
        %v831 = vld [vmem:[%s829 + $0x4] sm:$0xf]
        %v832 = vld [vmem:[%s829 + $0x8] sm:$0xf]
        %v833 = vld [vmem:[%s829 + $0xc] sm:$0xf]
        %v834 = vld [vmem:[%s829 + $0x10] sm:$0xf]
        %v835 = vld [vmem:[%s829 + $0x14] sm:$0xf]
        %v836 = vld [vmem:[%s829 + $0x18] sm:$0xf]
        %v837 = vld [vmem:[%s829 + $0x1c] sm:$0xf]
        %v838 = vpack.c.b16 %v666, %v665
        %v847 = vunpack.c.l.b16 %v830
        %v848 = vunpack.c.l.b16 %v831
        %v849 = vunpack.c.l.b16 %v832
        %v850 = vunpack.c.l.b16 %v833
        %v851 = vunpack.c.l.b16 %v834
        %v852 = vunpack.c.l.b16 %v835
        %v853 = vunpack.c.l.b16 %v836
        %v854 = vunpack.c.l.b16 %v837
        %v855 = vpack.c.b16 %v848, %v847
        %v856 = vpack.c.b16 %v850, %v849
        %v857 = vpack.c.b16 %v852, %v851
        %v858 = vpack.c.b16 %v854, %v853
        %v864 = vsel %vm710, %v838, 0
        %866 = vmatprep.subr.bf16.mxu0 0
        %867 = vmatpush1.bf16.msra.mxu0 %v855
        %868 = vmatprep.subr.bf16.mxu0 0
        %869 = vmatpush1.bf16.msra.mxu0 %v856
        %870 = vmatprep.subr.bf16.mxu0 0
        %871 = vmatpush1.bf16.msra.mxu0 %v857
        %872 = vmatprep.subr.bf16.mxu0 0
        %873 = vmatpush1.bf16.msra.mxu0 %v858
        %874 = vmatprep.subr.bf16.mxu0 0
        %875 = vmatpush1.bf16.msra.mxu0 0
        %876 = vmatprep.subr.bf16.mxu0 0
        %877 = vmatpush1.bf16.msra.mxu0 0
        %878 = vmatprep.subr.bf16.mxu0 0
        %879 = vmatpush1.bf16.msra.mxu0 0
        %880 = vmatprep.subr.bf16.mxu0 0
        %881 = vmatpush1.bf16.msra.mxu0 0
        %882 = vmatprep.subr.bf16.mxu0 0
        %883 = vmatpush1.bf16.msra.mxu0 0
        %884 = vmatprep.subr.bf16.mxu0 0
        %885 = vmatpush1.bf16.msra.mxu0 0
        %886 = vmatprep.subr.bf16.mxu0 0
        %887 = vmatpush1.bf16.msra.mxu0 0
        %888 = vmatprep.subr.bf16.mxu0 0
        %889 = vmatpush1.bf16.msra.mxu0 0
        %890 = vmatprep.subr.bf16.mxu0 0
        %891 = vmatpush1.bf16.msra.mxu0 0
        %892 = vmatprep.subr.bf16.mxu0 0
        %893 = vmatpush1.bf16.msra.mxu0 0
        %894 = vmatprep.subr.bf16.mxu0 0
        %895 = vmatpush1.bf16.msra.mxu0 0
        %896 = vmatprep.subr.bf16.mxu0 0
        %897 = vmatpush1.bf16.msra.mxu0 0
        %898 = vmatprep.mubr.bf16.mxu0 0
        %899 = vmatmul.mubr.bf16.gmra.mrb[0].mxu0 %v864
        %v900 = vpop.f32.mrb[0].mxu0
        %v901 = vadd.f32 0.0, %v900
        %v902 = vpop.f32.mrb[0].mxu0
        %v903 = vpop.f32.mrb[0].mxu0
        %v904 = vadd.f32 0.0, %v903
        %v905 = vpop.f32.mrb[0].mxu0
        %906 = vdwg.mxu0
        %v907 = vadd.f32 %v823, %v901
        %v908 = vadd.f32 %v826, %v904
        %v909 = vld [vmem:[#allocation3 + $0x4] sm:$0xf]
        %v910 = vld [vmem:[#allocation3 + $0x8] sm:$0xf]
        %v911 = vld [vmem:[#allocation3 + $0xc] sm:$0x1]
        %s912 = scalar_lea.vmem %s3, 96
        %v913 = vld [vmem:[%s912] sm:$0xf]
        %v914 = vld [vmem:[%s912 + $0x4] sm:$0xf]
        %v915 = vld [vmem:[%s912 + $0x8] sm:$0xf]
        %v916 = vld [vmem:[%s912 + $0xc] sm:$0xf]
        %v917 = vld [vmem:[%s912 + $0x10] sm:$0xf]
        %v918 = vld [vmem:[%s912 + $0x14] sm:$0xf]
        %v919 = vld [vmem:[%s912 + $0x18] sm:$0xf]
        %v920 = vld [vmem:[%s912 + $0x1c] sm:$0xf]
        %v924 = vunpack.c.l.b16 %v909
        %v925 = vunpack.c.l.b16 %v910
        %v926 = vunpack.c.l.b16 %v911
        %v927 = vpack.c.b16 %v925, %v924
        %v928 = vpack.c.b16 %v926, %v926
        %v930 = vshrl.u32 %v927, 16
        %v932 = vshll.u32 %v927, 16
        %v934 = vrot.slane %v932, 1
        %v935 = vor.u32 %v930, %v934
        %v937 = vshll.u32 %v928, 16
        %v939 = vrot.slane %v937, 1
        %v940 = vsel %vm476, %v935, %v939
        %v949 = vunpack.c.l.b16 %v913
        %v950 = vunpack.c.l.b16 %v914
        %v951 = vunpack.c.l.b16 %v915
        %v952 = vunpack.c.l.b16 %v916
        %v953 = vunpack.c.l.b16 %v917
        %v954 = vunpack.c.l.b16 %v918
        %v955 = vunpack.c.l.b16 %v919
        %v956 = vunpack.c.l.b16 %v920
        %v957 = vpack.c.b16 %v950, %v949
        %v958 = vpack.c.b16 %v952, %v951
        %v959 = vpack.c.b16 %v954, %v953
        %v960 = vpack.c.b16 %v956, %v955
        %v966 = vsel %vm710, %v940, 0
        %968 = vmatprep.subr.bf16.mxu0 0
        %969 = vmatpush1.bf16.msra.mxu0 %v957
        %970 = vmatprep.subr.bf16.mxu0 0
        %971 = vmatpush1.bf16.msra.mxu0 %v958
        %972 = vmatprep.subr.bf16.mxu0 0
        %973 = vmatpush1.bf16.msra.mxu0 %v959
        %974 = vmatprep.subr.bf16.mxu0 0
        %975 = vmatpush1.bf16.msra.mxu0 %v960
        %976 = vmatprep.subr.bf16.mxu0 0
        %977 = vmatpush1.bf16.msra.mxu0 0
        %978 = vmatprep.subr.bf16.mxu0 0
        %979 = vmatpush1.bf16.msra.mxu0 0
        %980 = vmatprep.subr.bf16.mxu0 0
        %981 = vmatpush1.bf16.msra.mxu0 0
        %982 = vmatprep.subr.bf16.mxu0 0
        %983 = vmatpush1.bf16.msra.mxu0 0
        %984 = vmatprep.subr.bf16.mxu0 0
        %985 = vmatpush1.bf16.msra.mxu0 0
        %986 = vmatprep.subr.bf16.mxu0 0
        %987 = vmatpush1.bf16.msra.mxu0 0
        %988 = vmatprep.subr.bf16.mxu0 0
        %989 = vmatpush1.bf16.msra.mxu0 0
        %990 = vmatprep.subr.bf16.mxu0 0
        %991 = vmatpush1.bf16.msra.mxu0 0
        %992 = vmatprep.subr.bf16.mxu0 0
        %993 = vmatpush1.bf16.msra.mxu0 0
        %994 = vmatprep.subr.bf16.mxu0 0
        %995 = vmatpush1.bf16.msra.mxu0 0
        %996 = vmatprep.subr.bf16.mxu0 0
        %997 = vmatpush1.bf16.msra.mxu0 0
        %998 = vmatprep.subr.bf16.mxu0 0
        %999 = vmatpush1.bf16.msra.mxu0 0
        %1000 = vmatprep.mubr.bf16.mxu0 0
        %1001 = vmatmul.mubr.bf16.gmra.mrb[0].mxu0 %v966
        %v1002 = vpop.f32.mrb[0].mxu0
        %v1003 = vadd.f32 0.0, %v1002
        %v1004 = vpop.f32.mrb[0].mxu0
        %v1005 = vpop.f32.mrb[0].mxu0
        %v1006 = vadd.f32 0.0, %v1005
        %v1007 = vpop.f32.mrb[0].mxu0
        %1008 = vdwg.mxu0
        %v1009 = vadd.f32 %v907, %v1003
        %v1010 = vadd.f32 %v908, %v1006
        %v1011 = vld [vmem:[#allocation3 + $0x4] sm:$0xe]
        %s1012 = scalar_lea.vmem %s3, 128
        %v1013 = vld [vmem:[%s1012] sm:$0xf]
        %v1014 = vld [vmem:[%s1012 + $0x4] sm:$0xf]
        %v1015 = vld [vmem:[%s1012 + $0x8] sm:$0xf]
        %v1016 = vld [vmem:[%s1012 + $0xc] sm:$0xf]
        %v1017 = vld [vmem:[%s1012 + $0x10] sm:$0xf]
        %v1018 = vld [vmem:[%s1012 + $0x14] sm:$0xf]
        %v1019 = vld [vmem:[%s1012 + $0x18] sm:$0xf]
        %v1020 = vld [vmem:[%s1012 + $0x1c] sm:$0xf]
        %v1022 = vunpack.c.l.b16 %v1011
        %v1023 = vpack.c.b16 %v925, %v1022
        %v1024 = vrot.slane %v1023, 1
        %v1025 = vrot.slane %v928, 1
        %v1026 = vsel %vm556, %v1024, %v1025
        %v1035 = vunpack.c.l.b16 %v1013
        %v1036 = vunpack.c.l.b16 %v1014
        %v1037 = vunpack.c.l.b16 %v1015
        %v1038 = vunpack.c.l.b16 %v1016
        %v1039 = vunpack.c.l.b16 %v1017
        %v1040 = vunpack.c.l.b16 %v1018
        %v1041 = vunpack.c.l.b16 %v1019
        %v1042 = vunpack.c.l.b16 %v1020
        %v1043 = vpack.c.b16 %v1036, %v1035
        %v1044 = vpack.c.b16 %v1038, %v1037
        %v1045 = vpack.c.b16 %v1040, %v1039
        %v1046 = vpack.c.b16 %v1042, %v1041
        %v1052 = vsel %vm710, %v1026, 0
        %1054 = vmatprep.subr.bf16.mxu0 0
        %1055 = vmatpush1.bf16.msra.mxu0 %v1043
        %1056 = vmatprep.subr.bf16.mxu0 0
        %1057 = vmatpush1.bf16.msra.mxu0 %v1044
        %1058 = vmatprep.subr.bf16.mxu0 0
        %1059 = vmatpush1.bf16.msra.mxu0 %v1045
        %1060 = vmatprep.subr.bf16.mxu0 0
        %1061 = vmatpush1.bf16.msra.mxu0 %v1046
        %1062 = vmatprep.subr.bf16.mxu0 0
        %1063 = vmatpush1.bf16.msra.mxu0 0
        %1064 = vmatprep.subr.bf16.mxu0 0
        %1065 = vmatpush1.bf16.msra.mxu0 0
        %1066 = vmatprep.subr.bf16.mxu0 0
        %1067 = vmatpush1.bf16.msra.mxu0 0
        %1068 = vmatprep.subr.bf16.mxu0 0
        %1069 = vmatpush1.bf16.msra.mxu0 0
        %1070 = vmatprep.subr.bf16.mxu0 0
        %1071 = vmatpush1.bf16.msra.mxu0 0
        %1072 = vmatprep.subr.bf16.mxu0 0
        %1073 = vmatpush1.bf16.msra.mxu0 0
        %1074 = vmatprep.subr.bf16.mxu0 0
        %1075 = vmatpush1.bf16.msra.mxu0 0
        %1076 = vmatprep.subr.bf16.mxu0 0
        %1077 = vmatpush1.bf16.msra.mxu0 0
        %1078 = vmatprep.subr.bf16.mxu0 0
        %1079 = vmatpush1.bf16.msra.mxu0 0
        %1080 = vmatprep.subr.bf16.mxu0 0
        %1081 = vmatpush1.bf16.msra.mxu0 0
        %1082 = vmatprep.subr.bf16.mxu0 0
        %1083 = vmatpush1.bf16.msra.mxu0 0
        %1084 = vmatprep.subr.bf16.mxu0 0
        %1085 = vmatpush1.bf16.msra.mxu0 0
        %1086 = vmatprep.mubr.bf16.mxu0 0
        %1087 = vmatmul.mubr.bf16.gmra.mrb[0].mxu0 %v1052
        %v1088 = vpop.f32.mrb[0].mxu0
        %v1089 = vadd.f32 0.0, %v1088
        %v1090 = vpop.f32.mrb[0].mxu0
        %v1091 = vpop.f32.mrb[0].mxu0
        %v1092 = vadd.f32 0.0, %v1091
        %v1093 = vpop.f32.mrb[0].mxu0
        %1094 = vdwg.mxu0
        %v1095 = vadd.f32 %v1009, %v1089
        %v1096 = vadd.f32 %v1010, %v1092
        %v1097 = vld [vmem:[%s4] sm:$0x1]
        %v1099 = vlaneseq
        %v1100 = vshrl.u32 %v1099, 7
        %v1101 = vsub.s32 0, %v1100
        %v1102 = vrot.slane %v1097, %v1101
        %v1104 = vadd.f32 %v1095, %v1102
        %v1105 = vadd.f32 %v1096, %v1102
        %v1106 = vmax.f32 %v1104, 0.0
        %v1107 = vmax.f32 %v1105, 0.0
        %1108 = vst.msk [vmem:[%s217] sm:$0xff] %vm288, %v1106
        %1109 = vst.msk [vmem:[%s217 + $0x8] sm:$0xff] %vm288, %v1107
        %s1110 = sand.u32 %s137, 1
        %s1111 = scalar_lea.sflag [#allocation5], %s1110
        %s1112 = sand.u32 %s137, 1
        %s1113 = smul.addr %s1112, 16
        %s1114 = scalar_lea.vmem [#allocation4], %s1113
        // Predicated region
        $region41: #{tpu_custom_call.1} parent=39 // pred_check
          %p1115 = pneg %p147
        $region42: #{tpu_custom_call.1} parent=39 // pred_check_branch
          %1117 = sbr.rel (%p1115) target = $region44
        $region43: #{tpu_custom_call.1} parent=39 // pred_region
          %s1119 = ssub.s32 256, 256
          %1120 = vsyncadd %s1111, %s1119
          %s1121 = smul.addr %s19, 2
          %s1122 = smul.addr %s1121, 128
          %s1123 = scalar_lea.hbm %s5, %s1122
          %s1124 = sshll.u32 %s1114, 4
          %s1125 = int_to_ptr.vmem [resolvable:$true] %s1124
          %1130 = dma.vmem_to_hbm [thread:$0]  %s1125, 256, %s1123, %s1111, 128, 128, 8
        $region44: #{tpu_custom_call.1} parent=39 // pred_fallthru
          _
      $region40: #{tpu_custom_call.1} parent=5 // pred_fallthru
        _
      %p1131 = scmp.le.s32.totalorder 2, %s14
      // Predicated region
      $region45: #{tpu_custom_call.1} parent=5 // pred_check
        %p1132 = pneg %p1131
      $region46: #{tpu_custom_call.1} parent=5 // pred_check_branch
        %1134 = sbr.rel (%p1132) target = $region48
      $region47: #{tpu_custom_call.1} parent=5 // pred_region
        %s1135 = ssub.s32 %s14, 2
        // Predicated region
        $region49: #{tpu_custom_call.1} parent=47 // pred_check
          %p1136 = pneg %p153
        $region50: #{tpu_custom_call.1} parent=47 // pred_check_branch
          %1138 = sbr.rel (%p1136) target = $region52
        $region51: #{tpu_custom_call.1} parent=47 // pred_region
          %s1139 = sand.u32 %s138, 1
          %s1140 = scalar_lea.sflag [#allocation5], %s1139
          %s1141 = sand.u32 %s138, 1
          %s1142 = smul.addr %s1141, 16
          %s1143 = scalar_lea.vmem [#allocation4], %s1142
          %1144 = dma.done %s1140, 256
        $region52: #{tpu_custom_call.1} parent=47 // pred_fallthru
          _
      $region48: #{tpu_custom_call.1} parent=5 // pred_fallthru
        _
    $region6: #{tpu_custom_call.1} parent=1 // loop_footer
      %s18 = sadd.s32 1, %s14
    $region7: #{tpu_custom_call.1} parent=1 // loop_footer_branch
      %13 = sbr.rel target = $region3
    $region8: #{tpu_custom_call.1} parent=1 // loop_exit
      _
    %1145 = vsyncpa [#allocation5], 1
    %s1146 = scalar_lea.sflag [#allocation5], 1
    %1147 = vsyncpa %s1146, 1

</llo_original>
